<compile_context>
chip_gen: v7x
topology: tpu7x:2x2x1
jax: 0.10.0
libtpu: 0.0.40
codegen_flags: <defaults>
</compile_context>

<pallas_src>
import jax
import jax.numpy as jnp
from jax.experimental import pallas as pl
from jax.experimental.pallas import tpu as pltpu


def _lanet_kernel(x_ref, w1_ref, w2_ref, o_ref):
    # x_ref:  [1, C, TN]  f32   (one image, one lane tile of HW)
    # w1_ref: [Cmid, C]   bf16  (VMEM-resident across the whole grid)
    # w2_ref: [1, Cmid]   bf16  (VMEM-resident across the whole grid)
    # o_ref:  [1, 1, TN]  bf16
    x = x_ref[0].astype(jnp.bfloat16)                                  # [C, TN]

    # conv1 (1x1, no bias) + ReLU: bf16 MXU matmul, f32 accumulation.
    h = jnp.dot(w1_ref[...], x, preferred_element_type=jnp.float32)   # [Cmid, TN]
    h = jnp.maximum(h, 0.0).astype(jnp.bfloat16)

    # conv2 (1x1, no bias) -> [1, TN], f32 accumulation.
    a = jnp.dot(w2_ref[...], h, preferred_element_type=jnp.float32)

    # Sigmoid: exp -> EUP slot, approx reciprocal -> EUP slot (both free here).
    sig = pl.reciprocal(1.0 + jnp.exp(-a), approx=True)
    o_ref[0] = sig.astype(o_ref.dtype)


def lanet_forward(x_nchw, w1, w2, *, lane_tile=2048, out_dtype=jnp.bfloat16):
    """x_nchw: [B, C, H, W] (f32). w1: [Cmid, C] conv1 weight, w2: [1, Cmid] conv2 weight.

    Returns the attention map [B, 1, H, W] in `out_dtype` (default bf16).
    """
    B, C, H, W = x_nchw.shape
    Cmid = w1.shape[0]
    assert w1.shape == (Cmid, C) and w2.shape == (1, Cmid)
    HW = H * W

    # No wrapper-side dtype cast on x (would add a full extra HBM pass on the
    # dominant operand); the reshape is metadata-only.
    x = x_nchw.reshape(B, C, HW)
    w1b = w1.astype(jnp.bfloat16)   # tiny, one-time
    w2b = w2.astype(jnp.bfloat16)

    # Lane tile: full HW if small, otherwise a 128-multiple cap that bounds
    # per-step VMEM on v7x (x f32 + h f32 + h bf16 + double buffering << 32 MiB
    # at C=512, Cmid=256) while keeping >=512 lanes so v5e's MXUs stay fed.
    tn = HW if HW <= lane_tile else lane_tile
    n_tiles = pl.cdiv(HW, tn)

    x_index = lambda b, n: (b, 0, n)
    if n_tiles >= 3:
        # Deeper input pipelining only when there are enough grid steps for it.
        x_spec = pl.BlockSpec((1, C, tn), x_index, pipeline_mode=pl.Buffered(3))
    else:
        x_spec = pl.BlockSpec((1, C, tn), x_index)

    bytes_accessed = (
        B * C * HW * x.dtype.itemsize          # x streamed in native dtype
        + Cmid * C * 2                         # w1 (bf16, resident)
        + Cmid * 2                             # w2 (bf16, resident)
        + B * HW * jnp.dtype(out_dtype).itemsize  # output
    )
    flops = 2 * B * HW * (Cmid * C + Cmid)

    out = pl.pallas_call(
        _lanet_kernel,
        out_shape=jax.ShapeDtypeStruct((B, 1, HW), out_dtype),
        grid_spec=pltpu.PrefetchScalarGridSpec(
            num_scalar_prefetch=0,
            grid=(B, n_tiles),
            in_specs=[
                x_spec,                                          # x: one (image, lane tile)
                pl.BlockSpec((Cmid, C), lambda b, n: (0, 0)),    # w1: VMEM-resident
                pl.BlockSpec((1, Cmid), lambda b, n: (0, 0)),    # w2: VMEM-resident
            ],
            out_specs=pl.BlockSpec((1, 1, tn), lambda b, n: (b, 0, n)),
        ),
        compiler_params=pltpu.CompilerParams(
            # Both grid axes are independent (no cross-step accumulation).
            dimension_semantics=("parallel", "parallel"),
        ),
        cost_estimate=pl.CostEstimate(
            flops=flops,
            transcendentals=B * HW,            # one exp per output pixel
            bytes_accessed=bytes_accessed,
        ),
    )(x, w1b, w2b)

    return out.reshape(B, 1, H, W)


def reference(x_nchw, w1, w2, out_dtype=jnp.bfloat16):
    """f32 math mirroring the kernel's rounding points (x->bf16, h->bf16)."""
    B, C, H, W = x_nchw.shape
    xb = x_nchw.reshape(B, C, H * W).astype(jnp.bfloat16).astype(jnp.float32)
    w1f = w1.astype(jnp.bfloat16).astype(jnp.float32)
    w2f = w2.astype(jnp.bfloat16).astype(jnp.float32)
    h = jnp.maximum(jnp.einsum("mc,bcs->bms", w1f, xb), 0.0)
    hb = h.astype(jnp.bfloat16).astype(jnp.float32)
    a = jnp.einsum("om,bms->bos", w2f, hb)
    sig = 1.0 / (1.0 + jnp.exp(-a))
    return sig.astype(out_dtype).reshape(B, 1, H, W)


if __name__ == "__main__":
    # Small shapes consistent with the module: LANet(in_chans=32, reduction_ratio=2.0)
    batch, in_chans, H, W = 2, 32, 16, 16
    mid_chans = int(in_chans / 2.0)

    key = jax.random.PRNGKey(0)
    kx, kw1, kw2 = jax.random.split(key, 3)

    x = jax.random.normal(kx, (batch, in_chans, H, W), dtype=jnp.float32)
    s1 = 1.0 / jnp.sqrt(jnp.float32(in_chans))
    s2 = 1.0 / jnp.sqrt(jnp.float32(mid_chans))
    # Conv 1x1 weights stored as [out_chans, in_chans] (trailing 1x1 dims squeezed).
    w1 = jax.random.uniform(kw1, (mid_chans, in_chans), minval=-s1, maxval=s1,
                            dtype=jnp.float32)
    w2 = jax.random.uniform(kw2, (1, mid_chans), minval=-s2, maxval=s2,
                            dtype=jnp.float32)

    out = lanet_forward(x, w1, w2)
    out = jax.block_until_ready(out)

    ref = reference(x, w1, w2, out.dtype)
    assert out.shape == (batch, 1, H, W)
    # bf16 output + approx reciprocal => compare with bf16-level tolerance.
    assert jnp.allclose(out.astype(jnp.float32), ref.astype(jnp.float32),
                        atol=2e-2, rtol=2e-2), "mismatch vs reference"

    print("KERNEL_OK")
</pallas_src>

<mosaic_0001>
module attributes {stable_mosaic.version = 11 : i64} {
  func.func @_lanet_kernel(%arg0: i32, %arg1: i32, %arg2: memref<1x32x256xf32, #tpu.memory_space<vmem>>, %arg3: memref<16x32xbf16, #tpu.memory_space<vmem>>, %arg4: memref<1x16xbf16, #tpu.memory_space<vmem>>, %arg5: memref<1x1x256xbf16, #tpu.memory_space<vmem>>) attributes {dimension_semantics = [#tpu.dimension_semantics<parallel>, #tpu.dimension_semantics<parallel>], iteration_bounds = array<i64: 2, 1>, scalar_prefetch = 0 : i64, scratch_operands = 0 : i64, tpu.core_type = #tpu.core_type<tc>, window_params = [{transform_indices = @transform_0, window_bounds = array<i64: 1, 32, 256>}, {pipeline_mode = #tpu.pipeline_mode<synchronous>, transform_indices = @transform_1, window_bounds = array<i64: 16, 32>}, {pipeline_mode = #tpu.pipeline_mode<synchronous>, transform_indices = @transform_2, window_bounds = array<i64: 1, 16>}, {transform_indices = @transform_3, window_bounds = array<i64: 1, 1, 256>}]} {
    %c0 = arith.constant 0 : index
    %c0_0 = arith.constant 0 : index
    %c0_1 = arith.constant 0 : index
    %0 = vector.load %arg2[%c0, %c0_0, %c0_1] : memref<1x32x256xf32, #tpu.memory_space<vmem>>, vector<1x32x256xf32>
    %1 = vector.shape_cast %0 : vector<1x32x256xf32> to vector<32x256xf32>
    %2 = arith.truncf %1 : vector<32x256xf32> to vector<32x256xbf16>
    %c0_2 = arith.constant 0 : index
    %c0_3 = arith.constant 0 : index
    %3 = vector.load %arg3[%c0_2, %c0_3] : memref<16x32xbf16, #tpu.memory_space<vmem>>, vector<16x32xbf16>
    %cst = arith.constant dense<0.000000e+00> : vector<16x256xf32>
    %4 = tpu.matmul %3, %2, %cst {dimension_numbers = #tpu.dot_dimension_numbers<[1], [0], [0], [1], [0, 0, 1, 1], [], []>} : vector<16x32xbf16>, vector<32x256xbf16>, vector<16x256xf32> -> vector<16x256xf32>
    %cst_4 = arith.constant 0.000000e+00 : f32
    %5 = vector.broadcast %cst_4 : f32 to vector<16x256xf32>
    %6 = arith.maximumf %4, %5 : vector<16x256xf32>
    %7 = arith.truncf %6 : vector<16x256xf32> to vector<16x256xbf16>
    %c0_5 = arith.constant 0 : index
    %c0_6 = arith.constant 0 : index
    %8 = vector.load %arg4[%c0_5, %c0_6] : memref<1x16xbf16, #tpu.memory_space<vmem>>, vector<1x16xbf16>
    %cst_7 = arith.constant dense<0.000000e+00> : vector<1x256xf32>
    %9 = tpu.matmul %8, %7, %cst_7 {dimension_numbers = #tpu.dot_dimension_numbers<[1], [0], [0], [1], [0, 0, 1, 1], [], []>} : vector<1x16xbf16>, vector<16x256xbf16>, vector<1x256xf32> -> vector<1x256xf32>
    %cst_8 = arith.constant 0.000000e+00 : f32
    %10 = vector.broadcast %cst_8 : f32 to vector<1x256xf32>
    %11 = arith.subf %10, %9 : vector<1x256xf32>
    %12 = math.exp %11 : vector<1x256xf32>
    %cst_9 = arith.constant 1.000000e+00 : f32
    %13 = vector.broadcast %cst_9 : f32 to vector<1x256xf32>
    %14 = arith.addf %13, %12 : vector<1x256xf32>
    %15 = tpu.reciprocal %14 {approx = true} : vector<1x256xf32> -> vector<1x256xf32>
    %16 = arith.truncf %15 : vector<1x256xf32> to vector<1x256xbf16>
    %c0_10 = arith.constant 0 : index
    %c0_11 = arith.constant 0 : index
    %c0_12 = arith.constant 0 : index
    %17 = vector.load %arg5[%c0_10, %c0_11, %c0_12] : memref<1x1x256xbf16, #tpu.memory_space<vmem>>, vector<1x1x256xbf16>
    %18 = vector.shape_cast %17 : vector<1x1x256xbf16> to vector<1x256xbf16>
    %19 = vector.shape_cast %16 : vector<1x256xbf16> to vector<1x1x256xbf16>
    tpu.vector_store %arg5[%c0_10, %c0_11, %c0_12], %19 {strides = array<i32>} : memref<1x1x256xbf16, #tpu.memory_space<vmem>>, vector<1x1x256xbf16>,
    return
  }
  func.func @transform_0(%arg0: i32, %arg1: i32) -> (i32, i32, i32) {
    %c0_i32 = arith.constant 0 : i32
    %c0_i32_0 = arith.constant 0 : i32
    return %arg0, %c0_i32, %arg1 : i32, i32, i32
  }
  func.func @transform_1(%arg0: i32, %arg1: i32) -> (i32, i32) {
    %c0_i32 = arith.constant 0 : i32
    %c0_i32_0 = arith.constant 0 : i32
    %c0_i32_1 = arith.constant 0 : i32
    return %c0_i32, %c0_i32_0 : i32, i32
  }
  func.func @transform_2(%arg0: i32, %arg1: i32) -> (i32, i32) {
    %c0_i32 = arith.constant 0 : i32
    %c0_i32_0 = arith.constant 0 : i32
    %c0_i32_1 = arith.constant 0 : i32
    return %c0_i32, %c0_i32_0 : i32, i32
  }
  func.func @transform_3(%arg0: i32, %arg1: i32) -> (i32, i32, i32) {
    %c0_i32 = arith.constant 0 : i32
    %c0_i32_0 = arith.constant 0 : i32
    return %arg0, %c0_i32, %arg1 : i32, i32, i32
  }
}

</mosaic_0001>

<llo_original>
// kernel: tpu_custom_call.1
$region0: #{tpu_custom_call.1}
  #allocation0 [shape = 'u32[]', space=smem, size = 0x4, offset = 0x4, fixed_abs, tag = 'smem constant byte address 0x4 - core index']
  #allocation1 [shape = 'u32[144,128]{1,0:T(1,128)}', space=vmem, size = 0x12000, scoped, tag = 'internal scratch']
  %s0 = inlined_call_operand.hbm [shape: f32[2,32,256], index: 0, kind: input, shape index: {}]
  %s1 = inlined_call_operand.hbm [shape: bf16[16,32], index: 1, kind: input, shape index: {}]
  %s2 = inlined_call_operand.vmem [shape: bf16[1,16], index: 2, kind: input, shape index: {}]
  %s3 = inlined_call_operand.vmem [shape: bf16[2,1,256], index: 3, kind: output, shape index: {}]
  %s4 = sld [smem:[#allocation0]]
  $region53: #{tpu_custom_call.1} parent=0
    _
  %s6 = ssub.s32 1, %s4
  %s7 = scalar_select 0, %s6, %s4
  $region1: #{tpu_custom_call.1} parent=0
    #allocation2 [shape = 'u8[65536]{0}', space=vmem, size = 0x10000, scoped, tag = 'input window, operand 0']
    #allocation3 [shape = 's32[2]{0}', space=sflag, size = 0x8, scoped, tag = 'scoped memory for tpu_custom_call.1']
    #allocation4 [shape = 'u8[4096]{0}', space=vmem, size = 0x1000, scoped, tag = 'input window, operand 1, single buffered']
    #allocation5 [shape = 's32[1]{0}', space=sflag, size = 0x4, scoped, tag = 'scoped memory for tpu_custom_call.1']
    %8 = vsyncpa [#allocation3], 0
    %s9 = scalar_lea.sflag [#allocation3], 1
    %10 = vsyncpa %s9, 0
    %11 = vsyncpa [#allocation5], 0
    loop: start=0, step=1, limit=4
    $region2: #{tpu_custom_call.1} parent=1 // loop_pre_header
      _
    $region3: #{tpu_custom_call.1} parent=1 // loop_header
      %s13 = sphi 0, %s17
      %p14 = scmp.ge.s32.totalorder %s13, 4
      %s20 = sphi 0, %s32
      %s21 = sphi 0, %s28
      %s22 = sphi 0, %s20
      %s23 = sphi 0, %s21
      %s24 = sphi 0, %s22
      %s25 = sphi 0, %s23
      %s37 = sphi 0, %s39
      %s40 = sphi 0, %s37
      %s41 = sphi 0, %s40
      %s57 = sphi 0, %s41
      %s61 = sphi 0, %s61
      %s63 = sphi 0, %s61
      %s64 = sphi 0, %s63
      %s78 = sphi 0, %s64
      %s82 = sphi 0, %s82
      %s84 = sphi 0, %s82
      %s85 = sphi 0, %s84
      %s99 = sphi 0, %s85
      %s107 = sphi 0, %s109
      %s110 = sphi 0, %s107
      %s111 = sphi 0, %s110
      %s127 = sphi 0, %s111
    $region4: #{tpu_custom_call.1} parent=1 // loop_header_branch
      %16 = sbr.rel (%p14) target = $region8
    $region5: #{tpu_custom_call.1} parent=1 // loop_body
      %s18 = ssub.s32 %s13, 1
      %s19 = ssub.s32 %s13, 2
      %s26 = sadd.s32 1, %s21
      %p27 = scmp.ge.s32.totalorder %s26, 1
      %s28 = scalar_select %p27, 0, %s26
      %s29 = sadd.s32 1, %s20
      %s30 = scalar_select %p27, %s29, %s20
      %p31 = scmp.ge.s32.totalorder %s30, 2
      %s32 = scalar_select %p31, 0, %s30
      %s33 = ssub.s32 %s20, %s32
      %s34 = ssub.s32 %s21, %s28
      %s35 = sor.u32 %s33, %s34
      %p36 = scmp.eq.s32.totalorder %s35, 0
      %s38 = sadd.s32 %s37, 1
      %s39 = scalar_select %p36, %s37, %s38
      %p42 = pneg %p36
      %p43 = scmp.eq.s32.totalorder %s13, 1
      %p44 = por %p42, %p43
      %p45 = scmp.ne.s32.totalorder %s37, %s40
      %p46 = scmp.eq.s32.totalorder %s13, 0
      %p47 = por %p45, %p46
      %p48 = scmp.ne.s32.totalorder %s37, %s40
      %p49 = scmp.eq.s32.totalorder %s18, 1
      %p50 = por %p48, %p49
      %p51 = scmp.ne.s32.totalorder %s40, %s41
      %p52 = scmp.eq.s32.totalorder %s18, 0
      %p53 = por %p51, %p52
      %p54 = scmp.ne.s32.totalorder %s40, %s41
      %p55 = scmp.eq.s32.totalorder %s19, 1
      %p56 = por %p54, %p55
      %p58 = scmp.ne.s32.totalorder %s41, %s57
      %p59 = scmp.eq.s32.totalorder %s19, 0
      %p60 = por %p58, %p59
      %s62 = sadd.s32 %s61, 1
      %p65 = scmp.eq.s32.totalorder %s13, 1
      %p66 = scmp.ne.s32.totalorder %s61, %s63
      %p67 = scmp.eq.s32.totalorder %s13, 0
      %p68 = por %p66, %p67
      %p69 = scmp.ne.s32.totalorder %s61, %s63
      %p70 = scmp.eq.s32.totalorder %s18, 1
      %p71 = por %p69, %p70
      %p72 = scmp.ne.s32.totalorder %s63, %s64
      %p73 = scmp.eq.s32.totalorder %s18, 0
      %p74 = por %p72, %p73
      %p75 = scmp.ne.s32.totalorder %s63, %s64
      %p76 = scmp.eq.s32.totalorder %s19, 1
      %p77 = por %p75, %p76
      %p79 = scmp.ne.s32.totalorder %s64, %s78
      %p80 = scmp.eq.s32.totalorder %s19, 0
      %p81 = por %p79, %p80
      %s83 = sadd.s32 %s82, 1
      %p86 = scmp.eq.s32.totalorder %s13, 1
      %p87 = scmp.ne.s32.totalorder %s82, %s84
      %p88 = scmp.eq.s32.totalorder %s13, 0
      %p89 = por %p87, %p88
      %p90 = scmp.ne.s32.totalorder %s82, %s84
      %p91 = scmp.eq.s32.totalorder %s18, 1
      %p92 = por %p90, %p91
      %p93 = scmp.ne.s32.totalorder %s84, %s85
      %p94 = scmp.eq.s32.totalorder %s18, 0
      %p95 = por %p93, %p94
      %p96 = scmp.ne.s32.totalorder %s84, %s85
      %p97 = scmp.eq.s32.totalorder %s19, 1
      %p98 = por %p96, %p97
      %p100 = scmp.ne.s32.totalorder %s85, %s99
      %p101 = scmp.eq.s32.totalorder %s19, 0
      %p102 = por %p100, %p101
      %s103 = ssub.s32 %s20, %s32
      %s104 = ssub.s32 %s21, %s28
      %s105 = sor.u32 %s103, %s104
      %p106 = scmp.eq.s32.totalorder %s105, 0
      %s108 = sadd.s32 %s107, 1
      %s109 = scalar_select %p106, %s107, %s108
      %p112 = pneg %p106
      %p113 = scmp.eq.s32.totalorder %s13, 1
      %p114 = por %p112, %p113
      %p115 = scmp.ne.s32.totalorder %s107, %s110
      %p116 = scmp.eq.s32.totalorder %s13, 0
      %p117 = por %p115, %p116
      %p118 = scmp.ne.s32.totalorder %s107, %s110
      %p119 = scmp.eq.s32.totalorder %s18, 1
      %p120 = por %p118, %p119
      %p121 = scmp.ne.s32.totalorder %s110, %s111
      %p122 = scmp.eq.s32.totalorder %s18, 0
      %p123 = por %p121, %p122
      %p124 = scmp.ne.s32.totalorder %s110, %s111
      %p125 = scmp.eq.s32.totalorder %s19, 1
      %p126 = por %p124, %p125
      %p128 = scmp.ne.s32.totalorder %s111, %s127
      %p129 = scmp.eq.s32.totalorder %s19, 0
      %p130 = por %p128, %p129
      %p131 = scmp.le.s32.totalorder 1, %s13
      %p132 = scmp.lt.s32.totalorder %s13, 3
      %p133 = pnand %p131, %p132
      %p134 = pneg %p133
      // Predicated region
      $region9: #{tpu_custom_call.1} parent=5 // pred_check
        _
      $region10: #{tpu_custom_call.1} parent=5 // pred_check_branch
        %136 = sbr.rel (%p133) target = $region12
      $region11: #{tpu_custom_call.1} parent=5 // pred_region
        %s137 = ssub.s32 %s13, 1
        // Predicated region
        $region13: #{tpu_custom_call.1} parent=11 // pred_check
          %p138 = pneg %p74
        $region14: #{tpu_custom_call.1} parent=11 // pred_check_branch
          %140 = sbr.rel (%p138) target = $region16
        $region15: #{tpu_custom_call.1} parent=11 // pred_region
          %s142 = ssub.s32 128, 128
          %143 = vsyncadd [#allocation5], %s142
          %s144 = sshll.u32 [#allocation4], 4
          %s145 = int_to_ptr.vmem [resolvable:$true] %s144
          %150 = dma.hbm_to_vmem [thread:$0]  %s1, 128, %s145, [#allocation5], 64, 64, 4
        $region16: #{tpu_custom_call.1} parent=11 // pred_fallthru
          _
        // Predicated region
        $region17: #{tpu_custom_call.1} parent=11 // pred_check
          %p151 = pneg %p95
        $region18: #{tpu_custom_call.1} parent=11 // pred_check_branch
          %153 = sbr.rel (%p151) target = $region20
        $region19: #{tpu_custom_call.1} parent=11 // pred_region
          _
        $region20: #{tpu_custom_call.1} parent=11 // pred_fallthru
          _
      $region12: #{tpu_custom_call.1} parent=5 // pred_fallthru
        _
      %p154 = scmp.lt.s32.totalorder %s13, 2
      // Predicated region
      $region21: #{tpu_custom_call.1} parent=5 // pred_check
        %p155 = pneg %p154
      $region22: #{tpu_custom_call.1} parent=5 // pred_check_branch
        %157 = sbr.rel (%p155) target = $region24
      $region23: #{tpu_custom_call.1} parent=5 // pred_region
        // Predicated region
        $region25: #{tpu_custom_call.1} parent=23 // pred_check
          %p158 = pneg %p47
        $region26: #{tpu_custom_call.1} parent=23 // pred_check_branch
          %160 = sbr.rel (%p158) target = $region28
        $region27: #{tpu_custom_call.1} parent=23 // pred_region
          %s161 = sand.u32 %s37, 1
          %s162 = scalar_lea.sflag [#allocation3], %s161
          %s163 = sand.u32 %s37, 1
          %s164 = smul.addr %s163, 64
          %s165 = scalar_lea.vmem [#allocation2], %s164
          %s166 = smul.u32 2, %s21
          %s168 = ssub.s32 1024, 1024
          %169 = vsyncadd %s162, %s168
          %s170 = smul.addr %s20, 8
          %s171 = sadd.s32 %s166, %s170
          %s172 = smul.addr %s171, 128
          %s173 = scalar_lea.hbm %s0, %s172
          %s174 = sshll.u32 %s165, 4
          %s175 = int_to_ptr.vmem [resolvable:$true] %s174
          %180 = dma.hbm_to_vmem [thread:$0]  %s173, 1024, %s175, %s162, 256, 256, 16
        $region28: #{tpu_custom_call.1} parent=23 // pred_fallthru
          _
      $region24: #{tpu_custom_call.1} parent=5 // pred_fallthru
        _
      %p181 = scmp.le.s32.totalorder 1, %s13
      %p182 = scmp.lt.s32.totalorder %s13, 3
      %p183 = pnand %p181, %p182
      %p184 = pneg %p183
      // Predicated region
      $region29: #{tpu_custom_call.1} parent=5 // pred_check
        _
      $region30: #{tpu_custom_call.1} parent=5 // pred_check_branch
        %186 = sbr.rel (%p183) target = $region32
      $region31: #{tpu_custom_call.1} parent=5 // pred_region
        %s187 = ssub.s32 %s13, 1
        %s188 = sand.u32 %s40, 1
        %s189 = scalar_lea.sflag [#allocation3], %s188
        %s190 = sand.u32 %s40, 1
        %s191 = smul.addr %s190, 64
        %s192 = scalar_lea.vmem [#allocation2], %s191
        // Predicated region
        $region33: #{tpu_custom_call.1} parent=31 // pred_check
          %p193 = pneg %p53
        $region34: #{tpu_custom_call.1} parent=31 // pred_check_branch
          %195 = sbr.rel (%p193) target = $region36
        $region35: #{tpu_custom_call.1} parent=31 // pred_region
          %196 = dma.done %s189, 1024
        $region36: #{tpu_custom_call.1} parent=31 // pred_fallthru
          _
        // Predicated region
        $region37: #{tpu_custom_call.1} parent=31 // pred_check
          %p197 = pneg %p74
        $region38: #{tpu_custom_call.1} parent=31 // pred_check_branch
          %199 = sbr.rel (%p197) target = $region40
        $region39: #{tpu_custom_call.1} parent=31 // pred_region
          %200 = dma.done [#allocation5], 128
        $region40: #{tpu_custom_call.1} parent=31 // pred_fallthru
          _
        %s201 = sand.u32 %s40, 1
        %s202 = scalar_lea.sflag [#allocation3], %s201
        %s203 = sand.u32 %s40, 1
        %s204 = smul.addr %s203, 64
        %s205 = scalar_lea.vmem [#allocation2], %s204
        %p206 = pneg %p53
        %p207 = pneg %p50
        %p208 = pneg %p74
        %p209 = pneg %p71
        %p210 = pneg %p95
        %p211 = pneg %p92
        %p212 = pneg %p123
        %p213 = pneg %p120
        %s214 = smul.u32 2, %s23
        %p215 = scmp.lt.s32.totalorder %s22, 1
        %s216 = scalar_select %p215, %s22, 1
        %p217 = scmp.lt.s32.totalorder %s214, 1
        %s218 = scalar_select %p217, %s214, 1
        %s219 = smul.addr %s216, 2
        %s220 = sadd.s32 %s218, %s219
        %s221 = scalar_lea.vmem %s3, %s220
        %s222 = smul.u32 2, %s23
        %s223 = smul.u32 2, %s23
        %p224 = scmp.lt.s32.totalorder %s22, 1
        %s225 = scalar_select %p224, %s22, 1
        %p226 = scmp.lt.s32.totalorder %s223, 1
        %s227 = scalar_select %p226, %s223, 1
        %s228 = smul.addr %s225, 2
        %s229 = sadd.s32 %s227, %s228
        %s230 = scalar_lea.vmem %s3, %s229
        %s231 = smul.u32 2, %s23
        %v233 = vld [vmem:[%s192] sm:$0xff]
        %v234 = vld [vmem:[%s192 + $0x8] sm:$0xff]
        %v235 = vld [vmem:[%s192 + $0x10] sm:$0xff]
        %v236 = vld [vmem:[%s192 + $0x18] sm:$0xff]
        %v237 = vld [vmem:[%s192 + $0x20] sm:$0xff]
        %v238 = vld [vmem:[%s192 + $0x28] sm:$0xff]
        %v239 = vld [vmem:[%s192 + $0x30] sm:$0xff]
        %v240 = vld [vmem:[%s192 + $0x38] sm:$0xff]
        %v241 = vpack.c.bf16 %v235, %v233
        %v242 = vpack.c.bf16 %v236, %v234
        %v243 = vpack.c.bf16 %v239, %v237
        %v244 = vpack.c.bf16 %v240, %v238
        %v245 = vld [vmem:[#allocation4] sm:$0xf]
        %v246 = vld [vmem:[#allocation4 + $0x4] sm:$0xf]
        %v249 = vunpack.c.l.b16 %v245
        %v250 = vunpack.c.l.b16 %v246
        %v251 = vpack.c.b16 %v250, %v249
        %vm252 = vcmask 261120
        %v254 = vsel %vm252, %v251, 0
        %256 = vmatprep.subr.bf16.mxu0 %v242
        %257 = vmatpush1.bf16.msra.mxu0 %v241
        %258 = vmatprep.subr.bf16.mxu0 %v244
        %259 = vmatpush1.bf16.msra.mxu0 %v243
        %260 = vmatprep.subr.bf16.mxu0 0
        %261 = vmatpush1.bf16.msra.mxu0 0
        %262 = vmatprep.subr.bf16.mxu0 0
        %263 = vmatpush1.bf16.msra.mxu0 0
        %264 = vmatprep.subr.bf16.mxu0 0
        %265 = vmatpush1.bf16.msra.mxu0 0
        %266 = vmatprep.subr.bf16.mxu0 0
        %267 = vmatpush1.bf16.msra.mxu0 0
        %268 = vmatprep.subr.bf16.mxu0 0
        %269 = vmatpush1.bf16.msra.mxu0 0
        %270 = vmatprep.subr.bf16.mxu0 0
        %271 = vmatpush1.bf16.msra.mxu0 0
        %272 = vmatprep.subr.bf16.mxu0 0
        %273 = vmatpush1.bf16.msra.mxu0 0
        %274 = vmatprep.subr.bf16.mxu0 0
        %275 = vmatpush1.bf16.msra.mxu0 0
        %276 = vmatprep.subr.bf16.mxu0 0
        %277 = vmatpush1.bf16.msra.mxu0 0
        %278 = vmatprep.subr.bf16.mxu0 0
        %279 = vmatpush1.bf16.msra.mxu0 0
        %280 = vmatprep.subr.bf16.mxu0 0
        %281 = vmatpush1.bf16.msra.mxu0 0
        %282 = vmatprep.subr.bf16.mxu0 0
        %283 = vmatpush1.bf16.msra.mxu0 0
        %284 = vmatprep.subr.bf16.mxu0 0
        %285 = vmatpush1.bf16.msra.mxu0 0
        %286 = vmatprep.subr.bf16.mxu0 0
        %287 = vmatpush1.bf16.msra.mxu0 0
        %288 = vmatprep.mubr.bf16.mxu0 0
        %289 = vmatmul.mubr.bf16.gmra.mrb[0].mxu0 %v254
        %v290 = vpop.f32.mrb[0].mxu0
        %v291 = vadd.f32 0.0, %v290
        %v292 = vpop.f32.mrb[0].mxu0
        %v293 = vadd.f32 0.0, %v292
        %v294 = vpop.f32.mrb[0].mxu0
        %v295 = vadd.f32 0.0, %v294
        %v296 = vpop.f32.mrb[0].mxu0
        %v297 = vadd.f32 0.0, %v296
        %298 = vdwg.mxu0
        %v299 = vmax.f32 %v291, 0.0
        %v300 = vmax.f32 %v293, 0.0
        %v301 = vmax.f32 %v295, 0.0
        %v302 = vmax.f32 %v297, 0.0
        %v303 = vpack.c.bf16 %v301, %v299
        %v304 = vpack.c.bf16 %v302, %v300
        %v305 = vld [vmem:[%s2] sm:$0x1]
        %vm306 = vcmask 130048
        %v308 = vsel %vm306, %v305, 0
        %310 = vmatprep.subr.bf16.mxu0 %v304
        %311 = vmatpush1.bf16.msra.mxu0 %v303
        %312 = vmatprep.subr.bf16.mxu0 0
        %313 = vmatpush1.bf16.msra.mxu0 0
        %314 = vmatprep.subr.bf16.mxu0 0
        %315 = vmatpush1.bf16.msra.mxu0 0
        %316 = vmatprep.subr.bf16.mxu0 0
        %317 = vmatpush1.bf16.msra.mxu0 0
        %318 = vmatprep.subr.bf16.mxu0 0
        %319 = vmatpush1.bf16.msra.mxu0 0
        %320 = vmatprep.subr.bf16.mxu0 0
        %321 = vmatpush1.bf16.msra.mxu0 0
        %322 = vmatprep.subr.bf16.mxu0 0
        %323 = vmatpush1.bf16.msra.mxu0 0
        %324 = vmatprep.subr.bf16.mxu0 0
        %325 = vmatpush1.bf16.msra.mxu0 0
        %326 = vmatprep.subr.bf16.mxu0 0
        %327 = vmatpush1.bf16.msra.mxu0 0
        %328 = vmatprep.subr.bf16.mxu0 0
        %329 = vmatpush1.bf16.msra.mxu0 0
        %330 = vmatprep.subr.bf16.mxu0 0
        %331 = vmatpush1.bf16.msra.mxu0 0
        %332 = vmatprep.subr.bf16.mxu0 0
        %333 = vmatpush1.bf16.msra.mxu0 0
        %334 = vmatprep.subr.bf16.mxu0 0
        %335 = vmatpush1.bf16.msra.mxu0 0
        %336 = vmatprep.subr.bf16.mxu0 0
        %337 = vmatpush1.bf16.msra.mxu0 0
        %338 = vmatprep.subr.bf16.mxu0 0
        %339 = vmatpush1.bf16.msra.mxu0 0
        %340 = vmatprep.subr.bf16.mxu0 0
        %341 = vmatpush1.bf16.msra.mxu0 0
        %342 = vmatprep.mubr.bf16.mxu0 0
        %343 = vmatmul.mubr.bf16.gmra.mrb[0].mxu0 %v308
        %v344 = vpop.f32.mrb[0].mxu0
        %v345 = vadd.f32 0.0, %v344
        %v346 = vpop.f32.mrb[0].mxu0
        %v347 = vadd.f32 0.0, %v346
        %v348 = vpop.f32.mrb[0].mxu0
        %v349 = vpop.f32.mrb[0].mxu0
        %350 = vdwg.mxu0
        %v351 = vsub.f32 0.0, %v345
        %v352 = vsub.f32 0.0, %v347
        %v353 = vmul.f32 %v351, 1.442695
        %v354 = vpow.pop %v353
        %v355 = vmul.f32 %v352, 1.442695
        %v356 = vpow.pop %v355
        %v357 = vadd.f32 %v354, 1.0
        %v358 = vadd.f32 %v356, 1.0
        %v359 = vrcp.pop %v357
        %v360 = vrcp.pop %v358
        %v361 = vpack.c.bf16 %v359, %v359
        %v362 = vpack.c.bf16 %v360, %v360
        %v365 = vcombine.low %v361, %v362
        %v367 = vunpack.c.l.s4 1966171168
        %v368 = vunpack.c.0.s8 %v367
        %v369 = vlaneseq
        %v370 = vshrl.u32 %v369, 7
        %v371 = vsub.s32 %v368, %v370
        %v372 = vrot.slane %v365, %v371
        %v374 = vunpack.c.l.s4 1966171168
        %v375 = vunpack.c.0.s8 %v374
        %v376 = vlaneseq
        %v377 = vshrl.u32 %v376, 7
        %v378 = vsub.s32 %v375, %v377
        %v379 = vrot.slane %v372, %v378
        %vm381 = vcmask 1040384
        %vm382 = vsmask.f32 256
        %vm383 = vmand %vm381, %vm382
        %vm384 = vcmask 1041409
        %vm385 = vsmask.f32 1280
        %vm386 = vmand %vm384, %vm385
        %vm387 = vmor %vm386, %vm383
        %v388 = vld [vmem:[%s230] sm:$0x3]
        %v389 = vsel %vm387, %v379, %v388
        %390 = vst [vmem:[%s230] sm:$0x3] %v389
        %s391 = smul.u32 2, %s23
        %p392 = scmp.lt.s32.totalorder %s22, 1
        %s393 = scalar_select %p392, %s22, 1
        %p394 = scmp.lt.s32.totalorder %s391, 1
        %s395 = scalar_select %p394, %s391, 1
        %s396 = smul.addr %s393, 2
        %s397 = sadd.s32 %s395, %s396
        %s398 = scalar_lea.vmem %s3, %s397
        // Predicated region
        $region41: #{tpu_custom_call.1} parent=31 // pred_check
          %p399 = pneg %p120
        $region42: #{tpu_custom_call.1} parent=31 // pred_check_branch
          %401 = sbr.rel (%p399) target = $region44
        $region43: #{tpu_custom_call.1} parent=31 // pred_region
          %s402 = smul.u32 2, %s23
        $region44: #{tpu_custom_call.1} parent=31 // pred_fallthru
          _
      $region32: #{tpu_custom_call.1} parent=5 // pred_fallthru
        _
      %p403 = scmp.le.s32.totalorder 2, %s13
      // Predicated region
      $region45: #{tpu_custom_call.1} parent=5 // pred_check
        %p404 = pneg %p403
      $region46: #{tpu_custom_call.1} parent=5 // pred_check_branch
        %406 = sbr.rel (%p404) target = $region48
      $region47: #{tpu_custom_call.1} parent=5 // pred_region
        %s407 = ssub.s32 %s13, 2
        // Predicated region
        $region49: #{tpu_custom_call.1} parent=47 // pred_check
          %p408 = pneg %p126
        $region50: #{tpu_custom_call.1} parent=47 // pred_check_branch
          %410 = sbr.rel (%p408) target = $region52
        $region51: #{tpu_custom_call.1} parent=47 // pred_region
          %s411 = smul.u32 2, %s25
          %p412 = scmp.lt.s32.totalorder %s24, 1
          %s413 = scalar_select %p412, %s24, 1
          %p414 = scmp.lt.s32.totalorder %s411, 1
          %s415 = scalar_select %p414, %s411, 1
          %s416 = smul.addr %s413, 2
          %s417 = sadd.s32 %s415, %s416
          %s418 = scalar_lea.vmem %s3, %s417
        $region52: #{tpu_custom_call.1} parent=47 // pred_fallthru
          _
      $region48: #{tpu_custom_call.1} parent=5 // pred_fallthru
        _
    $region6: #{tpu_custom_call.1} parent=1 // loop_footer
      %s17 = sadd.s32 1, %s13
    $region7: #{tpu_custom_call.1} parent=1 // loop_footer_branch
      %12 = sbr.rel target = $region3
    $region8: #{tpu_custom_call.1} parent=1 // loop_exit
      _
    %419 = vsyncpa [#allocation3], 1
    %s420 = scalar_lea.sflag [#allocation3], 1
    %421 = vsyncpa %s420, 1
    %422 = vsyncpa [#allocation5], 1

</llo_original>
